<compile_context>
chip_gen: v6e
topology: v6e:2x2x1
jax: 0.10.0
libtpu: 0.0.40
codegen_flags: <defaults>
</compile_context>

<pallas_src>
import math
from functools import partial

import jax
import jax.numpy as jnp
from jax import lax
from jax.experimental import pallas as pl
from jax.experimental.pallas import tpu as pltpu


_VMEM_LIMIT = 48 * 1024 * 1024  # > v5e's 16 MiB default scoped, < v7x's 64 MiB physical


# ------------------------------ tiled linear ------------------------------- #

def _pick_tile(full, preferred, aligns):
    """Largest tile t <= preferred with full % t == 0, aligned to the first
    alignment in `aligns` that divides `full`; falls back to the full dimension
    (always legal per Pallas tiling rules)."""
    for a in aligns:
        if full % a != 0:
            continue
        t = min(preferred, full)
        t -= t % a
        while t > 0 and full % t != 0:
            t -= a
        if t > 0:
            return t
    return full


def _linear_kernel(x_ref, w_ref, b_ref, o_ref, acc_ref):
    @pl.when(pl.program_id(2) == 0)
    def _():
        acc_ref[...] = jnp.zeros_like(acc_ref)

    # bf16 MXU operands, f32 accumulation (v5e/v6e/v7x MXUs are bf16-native).
    acc_ref[...] += jnp.dot(
        x_ref[...].astype(jnp.bfloat16),
        w_ref[...].astype(jnp.bfloat16),
        preferred_element_type=jnp.float32,
    )

    @pl.when(pl.program_id(2) == pl.num_programs(2) - 1)
    def _():
        o_ref[...] = (acc_ref[...] + b_ref[...]).astype(o_ref.dtype)


def pallas_linear(x, w, b):
    m, kdim = x.shape
    n = w.shape[1]
    tm = _pick_tile(m, 256, (256, 128, 8))   # MXU-height-aligned row tiles
    tn = _pick_tile(n, 256, (256, 128))
    tk = _pick_tile(kdim, 512, (256, 128))
    grid = (m // tm, n // tn, kdim // tk)

    return pl.pallas_call(
        _linear_kernel,
        out_shape=jax.ShapeDtypeStruct((m, n), jnp.float32),
        grid=grid,
        in_specs=[
            pl.BlockSpec((tm, tk), lambda i, j, kk: (i, kk)),
            pl.BlockSpec((tk, tn), lambda i, j, kk: (kk, j)),
            pl.BlockSpec((1, tn), lambda i, j, kk: (0, j)),
        ],
        out_specs=pl.BlockSpec((tm, tn), lambda i, j, kk: (i, j)),
        scratch_shapes=[pltpu.VMEM((tm, tn), jnp.float32)],
        compiler_params=pltpu.CompilerParams(
            dimension_semantics=("parallel", "parallel", "arbitrary"),
            vmem_limit_bytes=_VMEM_LIMIT,
        ),
    )(x, w, b.reshape(1, n))


# ---------------------------- attention kernel ----------------------------- #

_CONTRACT_LAST = (((1,), (1,)), ((), ()))  # contract last axis of both operands


def _softmax_lastdim(x):
    m = jnp.max(x, axis=-1, keepdims=True)
    e = jnp.exp(x - m)
    return e * pl.reciprocal(jnp.sum(e, axis=-1, keepdims=True), approx=True)


def _mha_kernel(qkv_ref, gp_ref, sig_ref, o_ref, *, num_heads, head_dim, scale):
    # qkv_ref: (1, n, 3*dim) VMEM   gp_ref: (num_heads, gp_num, head_dim) VMEM
    # sig_ref: (num_heads,) SMEM = sigmoid(alpha)   o_ref: (1, n, dim) VMEM
    dim = num_heads * head_dim
    bf16 = jnp.bfloat16

    for h in range(num_heads):          # small static unroll; static Ref slices are free
        lo = h * head_dim
        q = qkv_ref[0, :, lo:lo + head_dim]                               # (n, d) f32
        k = qkv_ref[0, :, dim + lo:dim + lo + head_dim]                   # (n, d)
        v = qkv_ref[0, :, 2 * dim + lo:2 * dim + lo + head_dim]           # (n, d)
        gp = gp_ref[h]                                                    # (m, d)
        sig = sig_ref[h]                                                  # scalar

        q_b = (q * scale).astype(bf16)   # fold softmax scale into q (n*d mults, not n*n)
        k_b = k.astype(bf16)
        v_b = v.astype(bf16)

        # scores: q @ k^T (contract last axes of both operands — no XLU transpose)
        s = lax.dot_general(q_b, k_b, _CONTRACT_LAST,
                            preferred_element_type=jnp.float32)           # (n, n)

        # group weights: v @ gp^T -> exact (erf) GELU -> softmax -> gw @ gw^T
        gw = lax.dot_general(v_b, gp.astype(bf16), _CONTRACT_LAST,
                             preferred_element_type=jnp.float32)          # (n, m)
        gw = 0.5 * gw * (1.0 + lax.erf(gw * (1.0 / math.sqrt(2.0))))      # f32 EUP/VPU
        gw = _softmax_lastdim(gw)
        g = lax.dot_general(gw.astype(bf16), gw.astype(bf16), _CONTRACT_LAST,
                            preferred_element_type=jnp.float32)           # (n, n)

        a = _softmax_lastdim(s * g)
        a = (1.0 - sig) * a + sig * g
        # torch: attn / (attn.sum(dim=2, keepdim=True) + 1e-8) -> sum over query axis.
        # Exact divide here so approx-reciprocal error doesn't compound.
        a = a / (jnp.sum(a, axis=0, keepdims=True) + 1e-8)
        # TODO(synk): nn.Dropout is identity here (eval semantics / p = 0.0).

        out_h = jnp.dot(a.astype(bf16), v_b, preferred_element_type=jnp.float32)

        # Per-head store: bounds the live range to one head; the HBM writeback
        # stays lane-dense because the output block is the full (1, n, dim) tile.
        o_ref[0, :, lo:lo + head_dim] = out_h.astype(o_ref.dtype)


# ------------------------------ module wrapper ----------------------------- #

def init_params(key, dim, num_heads, gp_num):
    k1, k2, k3, k4, k5, k6 = jax.random.split(key, 6)
    s = 0.02
    return {
        # stored pre-transposed for x @ w (torch Linear weight is (out, in))
        "w_qkv": jax.random.normal(k1, (dim, 3 * dim), jnp.float32) * s,
        "b_qkv": jax.random.normal(k2, (3 * dim,), jnp.float32) * s,
        "w_proj": jax.random.normal(k3, (dim, dim), jnp.float32) * s,
        "b_proj": jax.random.normal(k4, (dim,), jnp.float32) * s,
        # torch layout (gp_num, dim); reshaped to (h, gp_num, head_dim) like .view
        "w_gp": jax.random.normal(k5, (gp_num, dim), jnp.float32) * s,
        "alpha": jax.random.normal(k6, (1, num_heads, 1, 1), jnp.float32),
    }


def multi_head_attention(x, params, num_heads, gp_num):
    b, n, dim = x.shape
    d = dim // num_heads
    scale = d ** (-0.5)

    # qkv projection (tiled Pallas linear); stay in (b, n, 3*dim) layout —
    # the attention kernel slices heads from the Ref, no HBM transpose needed.
    xf = x.reshape(b * n, dim)
    qkv = pallas_linear(xf, params["w_qkv"], params["b_qkv"]).reshape(b, n, 3 * dim)

    gp = params["w_gp"].reshape(num_heads, gp_num, d)                 # torch .view
    sig_alpha = jax.nn.sigmoid(params["alpha"].reshape(num_heads))    # hoisted

    attn_out = pl.pallas_call(
        partial(_mha_kernel, num_heads=num_heads, head_dim=d, scale=scale),
        out_shape=jax.ShapeDtypeStruct((b, n, dim), jnp.float32),
        grid=(b,),
        in_specs=[
            pl.BlockSpec((1, n, 3 * dim), lambda bi: (bi, 0, 0)),
            pl.BlockSpec((num_heads, gp_num, d), lambda bi: (0, 0, 0)),  # loaded once
            pl.BlockSpec(memory_space=pltpu.MemorySpace.SMEM),
        ],
        out_specs=pl.BlockSpec((1, n, dim), lambda bi: (bi, 0, 0)),
        compiler_params=pltpu.CompilerParams(
            dimension_semantics=("parallel",),   # batch steps shard across TCs
            vmem_limit_bytes=_VMEM_LIMIT,
        ),
    )(qkv, gp, sig_alpha)

    out = pallas_linear(attn_out.reshape(b * n, dim),
                        params["w_proj"], params["b_proj"])
    return out.reshape(b, n, dim)


# ---------------------------- pure-JAX reference --------------------------- #

def reference(x, params, num_heads, gp_num):
    b, n, dim = x.shape
    d = dim // num_heads
    scale = d ** (-0.5)

    qkv = x.reshape(b * n, dim) @ params["w_qkv"] + params["b_qkv"]
    qkv = qkv.reshape(b, n, 3 * dim)
    q, k, v = jnp.split(qkv, 3, axis=-1)
    q = q.reshape(b, n, num_heads, d).transpose(0, 2, 1, 3)
    k = k.reshape(b, n, num_heads, d).transpose(0, 2, 1, 3)
    v = v.reshape(b, n, num_heads, d).transpose(0, 2, 1, 3)

    s = jnp.einsum("bhqd,bhkd->bhqk", q, k) * scale
    gp = params["w_gp"].reshape(num_heads, gp_num, d)
    gw = jnp.einsum("bhnd,hmd->bhnm", v, gp)
    gw = 0.5 * gw * (1.0 + lax.erf(gw / math.sqrt(2.0)))
    gw = jax.nn.softmax(gw, axis=-1)
    g = jnp.einsum("bhnm,bhkm->bhnk", gw, gw)

    a = jax.nn.softmax(s * g, axis=-1)
    sig = jax.nn.sigmoid(params["alpha"])
    a = (1.0 - sig) * a + sig * g
    a = a / (jnp.sum(a, axis=2, keepdims=True) + 1e-8)
    out = jnp.einsum("bhqk,bhkd->bhqd", a, v)
    out = out.transpose(0, 2, 1, 3).reshape(b * n, dim)
    return (out @ params["w_proj"] + params["b_proj"]).reshape(b, n, dim)


# ----------------------------------- main ----------------------------------- #

if __name__ == "__main__":
    dim, num_heads, gp_num = 32, 4, 4
    b, n = 2, 16

    key = jax.random.PRNGKey(0)
    kx, kp = jax.random.split(key)
    x = jax.random.normal(kx, (b, n, dim), jnp.float32)
    params = init_params(kp, dim, num_heads, gp_num)

    out = multi_head_attention(x, params, num_heads, gp_num)
    out = jax.block_until_ready(out)

    ref = reference(x, params, num_heads, gp_num)
    assert out.shape == (b, n, dim)
    # bf16 MXU operands with f32 accumulation; estimated error << tolerance here.
    assert bool(jnp.allclose(out, ref, atol=5e-3, rtol=5e-3)), "mismatch vs reference"

    print("KERNEL_OK")
</pallas_src>

<mosaic_0001>
module attributes {stable_mosaic.version = 11 : i64} {
  func.func @_linear_kernel(%arg0: i32, %arg1: i32, %arg2: i32, %arg3: memref<32x32xf32, #tpu.memory_space<vmem>>, %arg4: memref<32x96xf32, #tpu.memory_space<vmem>>, %arg5: memref<1x96xf32, #tpu.memory_space<vmem>>, %arg6: memref<32x96xf32, #tpu.memory_space<vmem>>, %arg7: memref<32x96xf32, #tpu.memory_space<vmem>>) attributes {dimension_semantics = [#tpu.dimension_semantics<parallel>, #tpu.dimension_semantics<parallel>, #tpu.dimension_semantics<arbitrary>], iteration_bounds = array<i64: 1, 1, 1>, scalar_prefetch = 0 : i64, scratch_operands = 1 : i64, tpu.core_type = #tpu.core_type<tc>, window_params = [{transform_indices = @transform_0, window_bounds = array<i64: 32, 32>}, {transform_indices = @transform_1, window_bounds = array<i64: 32, 96>}, {transform_indices = @transform_2, window_bounds = array<i64: 1, 96>}, {transform_indices = @transform_3, window_bounds = array<i64: 32, 96>}]} {
    %c0_i32 = arith.constant 0 : i32
    %0 = arith.cmpi eq, %arg2, %c0_i32 : i32
    %1 = arith.extui %0 : i1 to i32
    %c0_i32_0 = arith.constant 0 : i32
    %2 = arith.cmpi ne, %1, %c0_i32_0 : i32
    scf.if %2 {
      %cst_10 = arith.constant 0.000000e+00 : f32
      %14 = vector.broadcast %cst_10 : f32 to vector<32x96xf32>
      %c0_11 = arith.constant 0 : index
      %c0_12 = arith.constant 0 : index
      %15 = vector.load %arg7[%c0_11, %c0_12] : memref<32x96xf32, #tpu.memory_space<vmem>>, vector<32x96xf32>
      tpu.vector_store %arg7[%c0_11, %c0_12], %14 {strides = array<i32>} : memref<32x96xf32, #tpu.memory_space<vmem>>, vector<32x96xf32>,
    } else {
    }
    %c0 = arith.constant 0 : index
    %c0_1 = arith.constant 0 : index
    %3 = vector.load %arg7[%c0, %c0_1] : memref<32x96xf32, #tpu.memory_space<vmem>>, vector<32x96xf32>
    %c0_2 = arith.constant 0 : index
    %c0_3 = arith.constant 0 : index
    %4 = vector.load %arg3[%c0_2, %c0_3] : memref<32x32xf32, #tpu.memory_space<vmem>>, vector<32x32xf32>
    %5 = arith.truncf %4 : vector<32x32xf32> to vector<32x32xbf16>
    %c0_4 = arith.constant 0 : index
    %c0_5 = arith.constant 0 : index
    %6 = vector.load %arg4[%c0_4, %c0_5] : memref<32x96xf32, #tpu.memory_space<vmem>>, vector<32x96xf32>
    %7 = arith.truncf %6 : vector<32x96xf32> to vector<32x96xbf16>
    %cst = arith.constant dense<0.000000e+00> : vector<32x96xf32>
    %8 = tpu.matmul %5, %7, %cst {dimension_numbers = #tpu.dot_dimension_numbers<[1], [0], [0], [1], [0, 0, 1, 1], [], []>} : vector<32x32xbf16>, vector<32x96xbf16>, vector<32x96xf32> -> vector<32x96xf32>
    %9 = arith.addf %3, %8 : vector<32x96xf32>
    %c0_6 = arith.constant 0 : index
    %c0_7 = arith.constant 0 : index
    %10 = vector.load %arg7[%c0_6, %c0_7] : memref<32x96xf32, #tpu.memory_space<vmem>>, vector<32x96xf32>
    tpu.vector_store %arg7[%c0_6, %c0_7], %9 {strides = array<i32>} : memref<32x96xf32, #tpu.memory_space<vmem>>, vector<32x96xf32>,
    %c0_i32_8 = arith.constant 0 : i32
    %11 = arith.cmpi eq, %arg2, %c0_i32_8 : i32
    %12 = arith.extui %11 : i1 to i32
    %c0_i32_9 = arith.constant 0 : i32
    %13 = arith.cmpi ne, %12, %c0_i32_9 : i32
    scf.if %13 {
      %c0_10 = arith.constant 0 : index
      %c0_11 = arith.constant 0 : index
      %14 = vector.load %arg7[%c0_10, %c0_11] : memref<32x96xf32, #tpu.memory_space<vmem>>, vector<32x96xf32>
      %c0_12 = arith.constant 0 : index
      %c0_13 = arith.constant 0 : index
      %15 = vector.load %arg5[%c0_12, %c0_13] : memref<1x96xf32, #tpu.memory_space<vmem>>, vector<1x96xf32>
      %16 = vector.broadcast %15 : vector<1x96xf32> to vector<32x96xf32>
      %17 = arith.addf %14, %16 : vector<32x96xf32>
      %c0_14 = arith.constant 0 : index
      %c0_15 = arith.constant 0 : index
      %18 = vector.load %arg6[%c0_14, %c0_15] : memref<32x96xf32, #tpu.memory_space<vmem>>, vector<32x96xf32>
      tpu.vector_store %arg6[%c0_14, %c0_15], %17 {strides = array<i32>} : memref<32x96xf32, #tpu.memory_space<vmem>>, vector<32x96xf32>,
    } else {
    }
    return
  }
  func.func @transform_0(%arg0: i32, %arg1: i32, %arg2: i32) -> (i32, i32) {
    %c0_i32 = arith.constant 0 : i32
    return %arg0, %arg2 : i32, i32
  }
  func.func @transform_1(%arg0: i32, %arg1: i32, %arg2: i32) -> (i32, i32) {
    %c0_i32 = arith.constant 0 : i32
    return %arg2, %arg1 : i32, i32
  }
  func.func @transform_2(%arg0: i32, %arg1: i32, %arg2: i32) -> (i32, i32) {
    %c0_i32 = arith.constant 0 : i32
    %c0_i32_0 = arith.constant 0 : i32
    return %c0_i32, %arg1 : i32, i32
  }
  func.func @transform_3(%arg0: i32, %arg1: i32, %arg2: i32) -> (i32, i32) {
    %c0_i32 = arith.constant 0 : i32
    return %arg0, %arg1 : i32, i32
  }
}

</mosaic_0001>

<llo_original>
// kernel: tpu_custom_call.1
$region0: #{tpu_custom_call.1}
  #allocation0 [shape = 'u32[]', space=smem, size = 0x4, offset = 0x4, fixed_abs, tag = 'smem constant byte address 0x4 - core index']
  #allocation1 [shape = 'u32[144,128]{1,0:T(1,128)}', space=vmem, size = 0x12000, scoped, tag = 'internal scratch']
  #allocation2 [shape = 'f32[32,96]{1,0:T(8,128)}', space=vmem, size = 0x4000, scoped, tag = 'scratch operand']
  %s0 = inlined_call_operand.hbm [shape: f32[32,32], index: 0, kind: input, shape index: {}]
  %s1 = inlined_call_operand.hbm [shape: f32[32,96], index: 1, kind: input, shape index: {}]
  %s2 = inlined_call_operand.vmem [shape: f32[1,96], index: 2, kind: input, shape index: {}]
  %s3 = inlined_call_operand.hbm [shape: f32[32,96], index: 3, kind: output, shape index: {}]
  %s4 = sld [smem:[#allocation0]]
  $region38: #{tpu_custom_call.1} parent=0
    _
  %s6 = ssub.s32 1, %s4
  %s7 = scalar_select 0, %s6, %s4
  $region1: #{tpu_custom_call.1} parent=0
    #allocation3 [shape = 'u8[16384]{0}', space=vmem, size = 0x4000, scoped, tag = 'input window, operand 0, single buffered']
    #allocation4 [shape = 's32[1]{0}', space=sflag, size = 0x4, scoped, tag = 'scoped memory for tpu_custom_call.1']
    #allocation5 [shape = 's32[1]{0}', space=sflag, size = 0x4, scoped, tag = 'scoped memory for tpu_custom_call.1']
    #allocation6 [shape = 'u8[16384]{0}', space=vmem, size = 0x4000, scoped, tag = 'input window, operand 1, single buffered']
    #allocation7 [shape = 's32[1]{0}', space=sflag, size = 0x4, scoped, tag = 'scoped memory for tpu_custom_call.1']
    #allocation8 [shape = 'u8[16384]{0}', space=vmem, size = 0x4000, scoped, tag = 'output window, operand 0, single buffered']
    %8 = vsyncpa [#allocation4], 0
    %9 = vsyncpa [#allocation7], 0
    %10 = vsyncpa [#allocation5], 0
    // Predicated region
    $region2: #{tpu_custom_call.1} parent=1 // pred_check
      _
    $region3: #{tpu_custom_call.1} parent=1 // pred_check_branch
      %12 = sbr.rel (0) target = $region5
    $region4: #{tpu_custom_call.1} parent=1 // pred_region
      %s14 = ssub.s32 512, 512
      %15 = vsyncadd [#allocation4], %s14
      %s16 = sshll.u32 [#allocation3], 4
      %s17 = int_to_ptr.vmem [resolvable:$true] %s16
      %22 = dma.hbm_to_vmem [thread:$0]  %s0, 512, %s17, [#allocation4], 128, 128, 8
    $region5: #{tpu_custom_call.1} parent=1 // pred_fallthru
      _
    // Predicated region
    $region6: #{tpu_custom_call.1} parent=1 // pred_check
      _
    $region7: #{tpu_custom_call.1} parent=1 // pred_check_branch
      %24 = sbr.rel (0) target = $region9
    $region8: #{tpu_custom_call.1} parent=1 // pred_region
      %s26 = ssub.s32 512, 512
      %27 = vsyncadd [#allocation7], %s26
      %s28 = sshll.u32 [#allocation6], 4
      %s29 = int_to_ptr.vmem [resolvable:$true] %s28
      %34 = dma.hbm_to_vmem [thread:$0]  %s1, 512, %s29, [#allocation7], 128, 128, 8
    $region9: #{tpu_custom_call.1} parent=1 // pred_fallthru
      _
    // Predicated region
    $region10: #{tpu_custom_call.1} parent=1 // pred_check
      _
    $region11: #{tpu_custom_call.1} parent=1 // pred_check_branch
      %36 = sbr.rel (0) target = $region13
    $region12: #{tpu_custom_call.1} parent=1 // pred_region
      _
    $region13: #{tpu_custom_call.1} parent=1 // pred_fallthru
      _
    // Predicated region
    $region14: #{tpu_custom_call.1} parent=1 // pred_check
      _
    $region15: #{tpu_custom_call.1} parent=1 // pred_check_branch
      %38 = sbr.rel (0) target = $region17
    $region16: #{tpu_custom_call.1} parent=1 // pred_region
      %39 = dma.done [#allocation4], 512
    $region17: #{tpu_custom_call.1} parent=1 // pred_fallthru
      _
    // Predicated region
    $region18: #{tpu_custom_call.1} parent=1 // pred_check
      _
    $region19: #{tpu_custom_call.1} parent=1 // pred_check_branch
      %41 = sbr.rel (0) target = $region21
    $region20: #{tpu_custom_call.1} parent=1 // pred_region
      %42 = dma.done [#allocation7], 512
    $region21: #{tpu_custom_call.1} parent=1 // pred_fallthru
      _
    %p44 = scmp.eq.s32.totalorder 0, 0
    // Predicated region
    $region22: #{tpu_custom_call.1} parent=1 // pred_check
      %p45 = pneg %p44
    $region23: #{tpu_custom_call.1} parent=1 // pred_check_branch
      %47 = sbr.rel (%p45) target = $region25
    $region24: #{tpu_custom_call.1} parent=1 // pred_region
      %vm48 = vcmask 785408
      %49 = vst.msk [vmem:[#allocation2] sm:$0xff] %vm48, 0.0
      %50 = vst.msk [vmem:[#allocation2 + $0x8] sm:$0xff] %vm48, 0.0
      %51 = vst.msk [vmem:[#allocation2 + $0x10] sm:$0xff] %vm48, 0.0
      %52 = vst.msk [vmem:[#allocation2 + $0x18] sm:$0xff] %vm48, 0.0
    $region25: #{tpu_custom_call.1} parent=1 // pred_fallthru
      _
    %v53 = vld [vmem:[#allocation2] sm:$0xff]
    %v54 = vld [vmem:[#allocation2 + $0x8] sm:$0xff]
    %v55 = vld [vmem:[#allocation2 + $0x10] sm:$0xff]
    %v56 = vld [vmem:[#allocation2 + $0x18] sm:$0xff]
    %v57 = vld [vmem:[#allocation3] sm:$0xff]
    %v58 = vld [vmem:[#allocation3 + $0x8] sm:$0xff]
    %v59 = vld [vmem:[#allocation3 + $0x10] sm:$0xff]
    %v60 = vld [vmem:[#allocation3 + $0x18] sm:$0xff]
    %v61 = vpack.c.bf16 %v58, %v57
    %v62 = vpack.c.bf16 %v60, %v59
    %v63 = vld [vmem:[#allocation6] sm:$0xff]
    %v64 = vld [vmem:[#allocation6 + $0x8] sm:$0xff]
    %v65 = vld [vmem:[#allocation6 + $0x10] sm:$0xff]
    %v66 = vld [vmem:[#allocation6 + $0x18] sm:$0xff]
    %v67 = vpack.c.bf16 %v64, %v63
    %v68 = vpack.c.bf16 %v66, %v65
    %vm69 = vcmask 261120
    %v71 = vsel %vm69, %v61, 0
    %v74 = vsel %vm69, %v62, 0
    %76 = vmatprep.subr.bf16.mxu0 0
    %77 = vmatpush1.bf16.msra.mxu0 0
    %78 = vmatprep.subr.bf16.mxu0 0
    %79 = vmatpush1.bf16.msra.mxu0 0
    %80 = vmatprep.subr.bf16.mxu0 0
    %81 = vmatpush1.bf16.msra.mxu0 0
    %82 = vmatprep.subr.bf16.mxu0 0
    %83 = vmatpush1.bf16.msra.mxu0 0
    %84 = vmatprep.subr.bf16.mxu0 0
    %85 = vmatpush1.bf16.msra.mxu0 0
    %86 = vmatprep.subr.bf16.mxu0 0
    %87 = vmatpush1.bf16.msra.mxu0 0
    %88 = vmatprep.subr.bf16.mxu0 0
    %89 = vmatpush1.bf16.msra.mxu0 %v68
    %90 = vmatprep.subr.bf16.mxu0 0
    %91 = vmatpush1.bf16.msra.mxu0 %v67
    %92 = vmatprep.subr.bf16.mxu0 0
    %93 = vmatpush2.bf16.msra.mxu0 0
    %94 = vmatprep.subr.bf16.mxu0 0
    %95 = vmatpush2.bf16.msra.mxu0 0
    %96 = vmatprep.subr.bf16.mxu0 0
    %97 = vmatpush2.bf16.msra.mxu0 0
    %98 = vmatprep.subr.bf16.mxu0 0
    %99 = vmatpush2.bf16.msra.mxu0 0
    %100 = vmatprep.subr.bf16.mxu0 0
    %101 = vmatpush2.bf16.msra.mxu0 0
    %102 = vmatprep.subr.bf16.mxu0 0
    %103 = vmatpush2.bf16.msra.mxu0 0
    %104 = vmatprep.subr.bf16.mxu0 0
    %105 = vmatpush2.bf16.msra.mxu0 0
    %106 = vmatprep.subr.bf16.mxu0 0
    %107 = vmatpush2.bf16.msra.mxu0 0
    %108 = vmatprep.mubr.bf16.mxu0 0
    %109 = vmatmul.mubr.bf16.gmra.mxu0 %v71
    %v110 = vpop.f32.mrf.mxu0
    %v111 = vadd.f32 0.0, %v110
    %v112 = vpop.f32.mrf.mxu0
    %v113 = vpop.f32.mrf.mxu0
    %v114 = vadd.f32 0.0, %v113
    %v115 = vpop.f32.mrf.mxu0
    %116 = vmatprep.mubr.bf16.mxu0 0
    %117 = vmatmul.mubr.bf16.gmra.mxu0 %v74
    %v118 = vpop.f32.mrf.mxu0
    %v119 = vadd.f32 0.0, %v118
    %v120 = vpop.f32.mrf.mxu0
    %v121 = vpop.f32.mrf.mxu0
    %v122 = vadd.f32 0.0, %v121
    %v123 = vpop.f32.mrf.mxu0
    %124 = vdwg.mxu0
    %v125 = vadd.f32 %v53, %v111
    %v126 = vadd.f32 %v54, %v114
    %v127 = vadd.f32 %v55, %v119
    %v128 = vadd.f32 %v56, %v122
    %vm129 = vcmask 785408
    %130 = vst.msk [vmem:[#allocation2] sm:$0xff] %vm129, %v125
    %131 = vst.msk [vmem:[#allocation2 + $0x8] sm:$0xff] %vm129, %v126
    %132 = vst.msk [vmem:[#allocation2 + $0x10] sm:$0xff] %vm129, %v127
    %133 = vst.msk [vmem:[#allocation2 + $0x18] sm:$0xff] %vm129, %v128
    // Predicated region
    $region26: #{tpu_custom_call.1} parent=1 // pred_check
      %p134 = pneg %p44
    $region27: #{tpu_custom_call.1} parent=1 // pred_check_branch
      %136 = sbr.rel (%p134) target = $region29
    $region28: #{tpu_custom_call.1} parent=1 // pred_region
      %v137 = vld [vmem:[#allocation2] sm:$0xff]
      %v138 = vld [vmem:[#allocation2 + $0x8] sm:$0xff]
      %v139 = vld [vmem:[#allocation2 + $0x10] sm:$0xff]
      %v140 = vld [vmem:[#allocation2 + $0x18] sm:$0xff]
      %v141 = vld [vmem:[%s2] sm:$0x1]
      %v143 = vlaneseq
      %v144 = vshrl.u32 %v143, 7
      %v145 = vsub.s32 0, %v144
      %v146 = vrot.slane %v141, %v145
      %v148 = vadd.f32 %v137, %v146
      %v149 = vadd.f32 %v138, %v146
      %v150 = vadd.f32 %v139, %v146
      %v151 = vadd.f32 %v140, %v146
      %152 = vst.msk [vmem:[#allocation8] sm:$0xff] %vm129, %v148
      %153 = vst.msk [vmem:[#allocation8 + $0x8] sm:$0xff] %vm129, %v149
      %154 = vst.msk [vmem:[#allocation8 + $0x10] sm:$0xff] %vm129, %v150
      %155 = vst.msk [vmem:[#allocation8 + $0x18] sm:$0xff] %vm129, %v151
    $region29: #{tpu_custom_call.1} parent=1 // pred_fallthru
      _
    // Predicated region
    $region30: #{tpu_custom_call.1} parent=1 // pred_check
      _
    $region31: #{tpu_custom_call.1} parent=1 // pred_check_branch
      %157 = sbr.rel (0) target = $region33
    $region32: #{tpu_custom_call.1} parent=1 // pred_region
      %s159 = ssub.s32 512, 512
      %160 = vsyncadd [#allocation5], %s159
      %s161 = sshll.u32 [#allocation8], 4
      %s162 = int_to_ptr.vmem [resolvable:$true] %s161
      %167 = dma.vmem_to_hbm [thread:$0]  %s162, 512, %s3, [#allocation5], 128, 128, 8
    $region33: #{tpu_custom_call.1} parent=1 // pred_fallthru
      _
    // Predicated region
    $region34: #{tpu_custom_call.1} parent=1 // pred_check
      _
    $region35: #{tpu_custom_call.1} parent=1 // pred_check_branch
      %169 = sbr.rel (0) target = $region37
    $region36: #{tpu_custom_call.1} parent=1 // pred_region
      %170 = dma.done [#allocation5], 512
    $region37: #{tpu_custom_call.1} parent=1 // pred_fallthru
      _
    %171 = vsyncpa [#allocation4], 1
    %172 = vsyncpa [#allocation7], 1
    %173 = vsyncpa [#allocation5], 1

</llo_original>
